<compile_context>
chip_gen: v5e
topology: v5e:2x2
jax: 0.10.0
libtpu: 0.0.40
codegen_flags: <defaults>
</compile_context>

<pallas_src>
import jax
import jax.numpy as jnp
from jax.experimental import pallas as pl
from jax.experimental.pallas import tpu as pltpu


def _dma_copy_kernel(x_hbm_ref, o_hbm_ref, sem):
    # Pure HBM->HBM move on the DMA engine: zero TensorCore compute, no VMEM
    # staging, no grid.  A copy cannot beat the mem-bound roofline; this just
    # avoids adding anything on top of it.
    cp = pltpu.make_async_copy(x_hbm_ref, o_hbm_ref, sem)
    cp.start()
    cp.wait()


def _identity_copy(x: jax.Array) -> jax.Array:
    """Materializing identity: single HBM->HBM DMA via Pallas."""
    itemsize = jnp.dtype(x.dtype).itemsize
    return pl.pallas_call(
        _dma_copy_kernel,
        out_shape=jax.ShapeDtypeStruct(x.shape, x.dtype),
        in_specs=[pl.BlockSpec(memory_space=pl.ANY)],
        out_specs=pl.BlockSpec(memory_space=pl.ANY),
        scratch_shapes=[pltpu.SemaphoreType.DMA],
        cost_estimate=pl.CostEstimate(
            flops=0,
            transcendentals=0,
            bytes_accessed=2 * x.size * itemsize,
        ),
    )(x)


def identical_pool(x: jax.Array, batch: jax.Array, *, materialize: bool = False) -> jax.Array:
    """Pallas equivalent of IdenticalPool.forward(x, batch) -> x.

    Default (materialize=False): zero-cost — returns `x` unchanged, matching
    the PyTorch module (which returns its input tensor) with no extra HBM
    traffic and no kernel launch.

    materialize=True: returns a freshly written buffer produced by a single
    HBM->HBM DMA (for callers that require distinct output storage).
    """
    del batch  # ignored by the reference module as well
    if not materialize:
        return x
    return _identity_copy(x)


if __name__ == "__main__":
    key = jax.random.PRNGKey(0)
    k_x, _ = jax.random.split(key)

    # Small synthetic graph batch: 8 nodes, 32-dim features, 2 graphs.
    num_nodes, hidden = 8, 32
    x = jax.random.normal(k_x, (num_nodes, hidden), dtype=jnp.float32)
    batch = jnp.concatenate(
        [jnp.zeros((num_nodes // 2,), jnp.int32),
         jnp.ones((num_nodes - num_nodes // 2,), jnp.int32)]
    )

    # Hot path: true identity, no kernel, no copy.
    out_fast = identical_pool(x, batch)
    jax.block_until_ready(out_fast)
    assert out_fast.shape == x.shape and out_fast.dtype == x.dtype
    assert bool(jnp.array_equal(out_fast, x))

    # Materializing path: exercises the HBM->HBM DMA Pallas kernel.
    out_copy = identical_pool(x, batch, materialize=True)
    jax.block_until_ready(out_copy)
    assert out_copy.shape == x.shape and out_copy.dtype == x.dtype
    assert bool(jnp.array_equal(out_copy, x))

    print("KERNEL_OK")
</pallas_src>

<mosaic_0001>
module attributes {stable_mosaic.version = 11 : i64} {
  func.func @_dma_copy_kernel(%arg0: memref<8x32xf32, #tpu.memory_space<any>>, %arg1: memref<8x32xf32, #tpu.memory_space<any>>, %arg2: memref<!tpu.dma_semaphore, #tpu.memory_space<semaphore_mem>>) attributes {dimension_semantics = [], scalar_prefetch = 0 : i64, scratch_operands = 1 : i64, tpu.core_type = #tpu.core_type<tc>} {
    tpu.enqueue_dma source(%arg0 : memref<8x32xf32, #tpu.memory_space<any>>) target(%arg1 : memref<8x32xf32, #tpu.memory_space<any>>) target_semaphore(%arg2 : memref<!tpu.dma_semaphore, #tpu.memory_space<semaphore_mem>>)
    tpu.wait_dma2 semaphore(%arg2 : memref<!tpu.dma_semaphore, #tpu.memory_space<semaphore_mem>>) src(%arg0 : memref<8x32xf32, #tpu.memory_space<any>>) dst(%arg1 : memref<8x32xf32, #tpu.memory_space<any>>)
    return
  }
}

</mosaic_0001>

<llo_original>
// kernel: tpu_custom_call.1
$region0: #{tpu_custom_call.1}
  #allocation0 [shape = 'u32[]', space=smem, size = 0x4, offset = 0x4, fixed_abs, tag = 'smem constant byte address 0x4 - core index']
  #allocation1 [shape = 'u32[72,128]{1,0:T(1,128)}', space=vmem, size = 0x9000, scoped, tag = 'internal scratch']
  #allocation2 [shape = 's32[1]{0}', space=sflag, size = 0x4, scoped, tag = 'scratch operand']
  #allocation3 [shape = 's32[]', space=sflag, size = 0x4, offset = 0, fixed_abs, tag = 'sflag constant byte address 0x0 - dummy sync flag']
  #allocation4 [shape = 'u32[0]{0}', space=smem, size = 0, offset = 0, fixed_abs, tag = 'smem constant byte address 0x0 - null']
  %s0 = inlined_call_operand.hbm [shape: f32[8,32], index: 0, kind: input, shape index: {}]
  %s1 = inlined_call_operand.hbm [shape: f32[8,32], index: 1, kind: output, shape index: {}]
  %s2 = sld [smem:[#allocation0]]
  $region2: #{tpu_custom_call.1} parent=0
    _
  %s4 = ssub.s32 1, %s2
  %s5 = scalar_select 0, %s4, %s2
  %s7 = sshll.u32 1, 14
  %s8 = sxor.u32 4294967295, %s7
  %s10 = sshll.u32 %s0, 4
  %s11 = int_to_ptr.hbm [resolvable:$true] %s10
  %s12 = sshll.u32 %s1, 4
  %s13 = int_to_ptr.hbm [resolvable:$true] %s12
  %16 = dma.general %s11, 128, %s13, [#allocation2], [#allocation3], [#allocation4], 0, 0
  %s17 = smul.u32 8, 1
  %s18 = sshll.u32 %s17, 4
  %19 = dma.done [#allocation2], %s18
  %20 = vsyncmov [#allocation2]
  %s21 = vpop.sfrf %20
  %p22 = scmp.eq.s32.totalorder %s21, 0
  %p23 = pneg %p22
  %25 = shalt.err (%p23)

</llo_original>
